<compile_context>
chip_gen: v6e
topology: v6e:2x2x1
jax: 0.10.0
libtpu: 0.0.40
codegen_flags: <defaults>
</compile_context>

<pallas_src>
import functools

import jax
import jax.numpy as jnp
from jax.experimental import pallas as pl
from jax.experimental.pallas import tpu as pltpu

LANE = 128   # TPU lane width; gate/expert head column blocks are padded to this.


# ----------------------------------------------------------------------------
# pltpu.roll shift-sign probe (resolved once, outside the main kernel)
# ----------------------------------------------------------------------------
@functools.lru_cache(maxsize=None)
def _roll_sign():
    """+1 if pltpu.roll follows jnp.roll's shift convention, else -1."""
    x = jnp.arange(8 * 128, dtype=jnp.float32).reshape(8, 128)

    def k(x_ref, o_ref):
        o_ref[...] = pltpu.roll(x_ref[...], 1, 0)

    y = pl.pallas_call(k, out_shape=jax.ShapeDtypeStruct((8, 128), jnp.float32))(x)
    return 1 if bool(jnp.allclose(y, jnp.roll(x, 1, axis=0))) else -1


# ----------------------------------------------------------------------------
# Fused kernel: conv stem + residual block + global avg pool + MoE head
# ----------------------------------------------------------------------------
def _fused_kernel_factory(H, W, bb, cin, F, E, cdt):
    HW = H * W
    M = bb * HW                              # flat rows per grid step
    taps = [(dy, dx) for dy in (-1, 0, 1) for dx in (-1, 0, 1)]
    sgn = _roll_sign()

    def coords(n):
        r = jax.lax.broadcasted_iota(jnp.int32, (M, n), 0)
        return r % W, (r // W) % H           # per-pixel (x, y) within each image

    def shifted_tap(src, xi, yi, dy, dx):
        """(M, C) slab whose row p holds src[p + dy*W + dx] when that neighbour
        is inside the same image (flat row-major y*W + x layout), else 0."""
        d = dy * W + dx
        out = src if d == 0 else pltpu.roll(src, (sgn * -d) % M, 0)
        cond = None
        if dx == -1:
            cond = xi >= 1
        elif dx == 1:
            cond = xi <= W - 2
        if dy == -1:
            c = yi >= 1
            cond = c if cond is None else jnp.logical_and(cond, c)
        elif dy == 1:
            c = yi <= H - 2
            cond = c if cond is None else jnp.logical_and(cond, c)
        if cond is None:
            return out
        return jnp.where(cond, out, 0.0)

    def kernel(x_ref, ws_ref, bs_ref, w1_ref, b1_ref, w2_ref, b2_ref,
               wh_ref, bh_ref, o_ref, h_ref, patch_ref):
        # ---- stem conv (cin -> F) + ReLU: 9 masked-rolled taps, K=cin GEMMs --
        # TODO(synk): the 9 K=cin taps could be packed into a single (M, 9*cin)
        # GEMM, but lane-concat of 4-wide slabs is a relayout risk for ~1 MFLOP.
        x = x_ref[...].reshape(M, cin)                       # f32, flat layout
        xi_c, yi_c = coords(cin)
        acc = jnp.zeros((M, F), jnp.float32)
        for t, (dy, dx) in enumerate(taps):
            s = shifted_tap(x, xi_c, yi_c, dy, dx).astype(cdt)
            acc = acc + jnp.dot(s, ws_ref[t], preferred_element_type=jnp.float32)
        # f32 skip operand parked in VMEM (not kept live in vregs across convs)
        h_ref[...] = jnp.maximum(acc + bs_ref[...], 0.0)     # (M, F) f32

        xi, yi = coords(F)

        def conv3x3(src_f32, w_ref, b_ref):
            # Lane-aligned on-chip im2col: 9 rolled taps written to 128-aligned
            # column blocks of a VMEM scratch, then ONE deep-K (9F) MXU GEMM.
            for t, (dy, dx) in enumerate(taps):
                patch_ref[:, t * F:(t + 1) * F] = (
                    shifted_tap(src_f32, xi, yi, dy, dx).astype(cdt))
            return jnp.dot(patch_ref[...], w_ref[...],
                           preferred_element_type=jnp.float32) + b_ref[...]

        h1 = jnp.maximum(conv3x3(h_ref[...], w1_ref, b1_ref), 0.0)       # (M,F) f32
        h2 = jnp.maximum(conv3x3(h1, w2_ref, b2_ref) + h_ref[...], 0.0)  # f32 skip

        # ---- fused epilogue: per-image global average pool + MoE head -------
        if bb == 1:
            pooled = jnp.sum(h2, axis=0, keepdims=True) * (1.0 / HW)     # (1, F)
        else:
            pooled = jnp.sum(h2.reshape(bb, HW, F), axis=1) * (1.0 / HW)  # (bb,F)
        head = jnp.dot(pooled.astype(cdt), wh_ref[...],
                       preferred_element_type=jnp.float32) + bh_ref[...]  # (bb, NH)
        g = jax.nn.sigmoid(head[:, :E])                                   # (bb, E)
        mixed = jnp.zeros((bb, LANE), jnp.float32)
        for e in range(E):        # static unroll; expert blocks are whole vregs
            blk = head[:, LANE * (1 + e):LANE * (2 + e)]
            mixed = mixed + g[:, e:e + 1] * blk
        o_ref[...] = mixed.reshape(bb, 1, LANE)              # lane-dense store

    return kernel


# ----------------------------------------------------------------------------
# Wrapper
# ----------------------------------------------------------------------------
def resnet_moe_forward(x_nchw, p, *, compute_dtype=jnp.bfloat16, bb=None):
    """ResnetMoE forward: x (B, Cin, H, W) f32 -> mixed logits (B, n_classes)."""
    B, Cin, H, W = x_nchw.shape
    F = p["stem_w"].shape[-1]
    E = p["gate_w"].shape[1]
    C = p["expert_w"].shape[2]
    HW = H * W
    cdt = compute_dtype
    assert F % LANE == 0 and HW % 8 == 0 and C <= LANE and E <= LANE

    if bb is None:
        # A few images per grid step amortizes per-step overhead, but keep the
        # "parallel" grid length >= 2 so both v7x TensorCores stay busy.
        bb = max(1, min(4, B // 2))
    Bp = pl.cdiv(B, bb) * bb

    # NCHW -> flat (B, H*W, Cin): pixels row-major on sublanes, channels on lanes.
    xf = jnp.transpose(x_nchw, (0, 2, 3, 1)).reshape(B, HW, Cin).astype(jnp.float32)
    if Bp != B:
        xf = jnp.pad(xf, ((0, Bp - B), (0, 0), (0, 0)))

    def stem_taps(w):                # (3,3,Cin,F) HWIO -> (9, Cin, F)
        return w.reshape(9, w.shape[2], w.shape[3]).astype(cdt)

    def packed(w):                   # (3,3,F,F) HWIO -> (9F, F): K order [tap][cin]
        return w.reshape(9 * F, F).astype(cdt)

    # Gate head + all expert heads packed into one lane-aligned matrix:
    #   column block 0 -> gate logits (E cols used), block 1+e -> expert e (C cols).
    NH = LANE * (1 + E)
    wh = jnp.zeros((F, NH), jnp.float32).at[:, :E].set(p["gate_w"])
    bh = jnp.zeros((NH,), jnp.float32).at[:E].set(p["gate_b"])
    for e in range(E):
        off = LANE * (1 + e)
        wh = wh.at[:, off:off + C].set(p["expert_w"][e])
        bh = bh.at[off:off + C].set(p["expert_b"][e])

    kernel = _fused_kernel_factory(H, W, bb, Cin, F, E, cdt)
    res = lambda ndim: (lambda b: (0,) * ndim)     # resident (weight) blocks

    out = pl.pallas_call(
        kernel,
        out_shape=jax.ShapeDtypeStruct((Bp, 1, LANE), jnp.float32),
        grid=(Bp // bb,),
        in_specs=[
            pl.BlockSpec((bb, HW, Cin), lambda b: (b, 0, 0)),   # input images
            pl.BlockSpec((9, Cin, F), res(3)),                  # stem taps
            pl.BlockSpec((1, F), res(2)),                       # stem bias
            pl.BlockSpec((9 * F, F), res(2)),                   # conv1 packed
            pl.BlockSpec((1, F), res(2)),
            pl.BlockSpec((9 * F, F), res(2)),                   # conv2 packed
            pl.BlockSpec((1, F), res(2)),
            pl.BlockSpec((F, NH), res(2)),                      # fused head W
            pl.BlockSpec((1, NH), res(2)),                      # fused head b
        ],
        out_specs=pl.BlockSpec((bb, 1, LANE), lambda b: (b, 0, 0)),
        scratch_shapes=[pltpu.VMEM((bb * HW, F), jnp.float32),  # f32 skip operand
                        pltpu.VMEM((bb * HW, 9 * F), cdt)],     # shared im2col
        compiler_params=pltpu.CompilerParams(
            dimension_semantics=("parallel",),
            vmem_limit_bytes=32 * 1024 * 1024),
    )(xf,
      stem_taps(p["stem_w"]), p["stem_b"].reshape(1, F),
      packed(p["conv1_w"]), p["conv1_b"].reshape(1, F),
      packed(p["conv2_w"]), p["conv2_b"].reshape(1, F),
      wh.astype(cdt), bh.reshape(1, NH))
    return out[:B, 0, :C]


# ----------------------------------------------------------------------------
# Pure-JAX reference and params
# ----------------------------------------------------------------------------
def reference_forward(x_nchw, p, compute_dtype=jnp.float32):
    cdt = compute_dtype
    hi = jax.lax.Precision.HIGHEST
    x = jnp.transpose(x_nchw, (0, 2, 3, 1))

    def conv(z, w, b):
        return jax.lax.conv_general_dilated(
            z.astype(cdt), w.astype(cdt), (1, 1), "SAME",
            dimension_numbers=("NHWC", "HWIO", "NHWC"),
            precision=hi, preferred_element_type=jnp.float32) + b

    h = jax.nn.relu(conv(x, p["stem_w"], p["stem_b"]))
    h1 = jax.nn.relu(conv(h, p["conv1_w"], p["conv1_b"]))
    h2 = jax.nn.relu(conv(h1, p["conv2_w"], p["conv2_b"]) + h)
    feat = jnp.mean(h2, axis=(1, 2))                                       # (B,F)
    g = jax.nn.sigmoid(
        jnp.dot(feat.astype(cdt), p["gate_w"].astype(cdt),
                precision=hi, preferred_element_type=jnp.float32) + p["gate_b"])
    logits = jnp.einsum("bf,efc->bec", feat.astype(cdt),
                        p["expert_w"].astype(cdt),
                        precision=hi, preferred_element_type=jnp.float32)
    logits = logits + p["expert_b"]                                        # (B,E,C)
    return jnp.sum(g[:, :, None] * logits, axis=1)                         # (B,C)


def init_params(key, cin, width, n_classes, n_experts):
    ks = jax.random.split(key, 10)
    s = 0.1
    f32 = jnp.float32
    return {
        "stem_w": s * jax.random.normal(ks[0], (3, 3, cin, width), f32),
        "stem_b": s * jax.random.normal(ks[1], (width,), f32),
        "conv1_w": s * jax.random.normal(ks[2], (3, 3, width, width), f32),
        "conv1_b": s * jax.random.normal(ks[3], (width,), f32),
        "conv2_w": s * jax.random.normal(ks[4], (3, 3, width, width), f32),
        "conv2_b": s * jax.random.normal(ks[5], (width,), f32),
        "gate_w": s * jax.random.normal(ks[6], (width, n_experts), f32),
        "gate_b": s * jax.random.normal(ks[7], (n_experts,), f32),
        "expert_w": s * jax.random.normal(ks[8], (n_experts, width, n_classes), f32),
        "expert_b": s * jax.random.normal(ks[9], (n_experts, n_classes), f32),
    }


if __name__ == "__main__":
    # Backbone width 128 keeps every conv GEMM output lane-dense.
    B, CIN, H, W = 2, 4, 16, 16
    WIDTH, NCLASSES, NEXPERTS = 128, 10, 3

    key = jax.random.PRNGKey(0)
    kx, kp = jax.random.split(key)
    x = jax.random.normal(kx, (B, CIN, H, W), jnp.float32)
    params = init_params(kp, CIN, WIDTH, NCLASSES, NEXPERTS)

    _roll_sign()   # resolve the pltpu.roll shift convention before tracing

    fwd_f32 = jax.jit(functools.partial(resnet_moe_forward,
                                        compute_dtype=jnp.float32))
    fwd_bf16 = jax.jit(functools.partial(resnet_moe_forward,
                                         compute_dtype=jnp.bfloat16))

    # f32 path: tight check against a full-precision reference.
    out_f32 = jax.block_until_ready(fwd_f32(x, params))
    ref_f32 = reference_forward(x, params, jnp.float32)
    assert out_f32.shape == (B, NCLASSES), out_f32.shape
    assert jnp.allclose(out_f32, ref_f32, atol=2e-3, rtol=2e-3), (out_f32, ref_f32)

    # bf16 MXU path (default): check against a reference that casts its matmul
    # inputs to bf16 at the same points (f32 accumulation, f32 skip).
    out_bf16 = jax.block_until_ready(fwd_bf16(x, params))
    ref_bf16 = reference_forward(x, params, jnp.bfloat16)
    assert out_bf16.shape == (B, NCLASSES), out_bf16.shape
    assert jnp.allclose(out_bf16, ref_bf16, atol=2e-2, rtol=2e-2), (out_bf16, ref_bf16)

    print("KERNEL_OK")
</pallas_src>

<mosaic_0001>
module attributes {stable_mosaic.version = 11 : i64} {
  func.func @k(%arg0: memref<8x128xf32, #tpu.memory_space<vmem>>, %arg1: memref<8x128xf32, #tpu.memory_space<vmem>>) attributes {dimension_semantics = [], scalar_prefetch = 0 : i64, scratch_operands = 0 : i64, tpu.core_type = #tpu.core_type<tc>} {
    %c0 = arith.constant 0 : index
    %c0_0 = arith.constant 0 : index
    %0 = vector.load %arg0[%c0, %c0_0] : memref<8x128xf32, #tpu.memory_space<vmem>>, vector<8x128xf32>
    %c1_i32 = arith.constant 1 : i32
    %1 = tpu.dynamic_rotate %0 by %c1_i32 dim 0 : vector<8x128xf32>, i32 -> vector<8x128xf32>
    %c0_1 = arith.constant 0 : index
    %c0_2 = arith.constant 0 : index
    %2 = vector.load %arg1[%c0_1, %c0_2] : memref<8x128xf32, #tpu.memory_space<vmem>>, vector<8x128xf32>
    tpu.vector_store %arg1[%c0_1, %c0_2], %1 {strides = array<i32>} : memref<8x128xf32, #tpu.memory_space<vmem>>, vector<8x128xf32>,
    return
  }
}

</mosaic_0001>

<llo_original>
// kernel: tpu_custom_call.1
$region0: #{tpu_custom_call.1}
  #allocation0 [shape = 'u32[]', space=smem, size = 0x4, offset = 0x4, fixed_abs, tag = 'smem constant byte address 0x4 - core index']
  #allocation1 [shape = 'u32[144,128]{1,0:T(1,128)}', space=vmem, size = 0x12000, scoped, tag = 'internal scratch']
  %s0 = inlined_call_operand.hbm [shape: f32[8,128], index: 0, kind: input, shape index: {}]
  %s1 = inlined_call_operand.hbm [shape: f32[8,128], index: 1, kind: output, shape index: {}]
  %s2 = sld [smem:[#allocation0]]
  $region18: #{tpu_custom_call.1} parent=0
    _
  %s4 = ssub.s32 1, %s2
  %s5 = scalar_select 0, %s4, %s2
  $region1: #{tpu_custom_call.1} parent=0
    #allocation2 [shape = 'u8[4096]{0}', space=vmem, size = 0x1000, scoped, tag = 'input window, operand 0, single buffered']
    #allocation3 [shape = 's32[1]{0}', space=sflag, size = 0x4, scoped, tag = 'scoped memory for tpu_custom_call.1']
    #allocation4 [shape = 's32[1]{0}', space=sflag, size = 0x4, scoped, tag = 'scoped memory for tpu_custom_call.1']
    #allocation5 [shape = 'u8[4096]{0}', space=vmem, size = 0x1000, scoped, tag = 'output window, operand 0, single buffered']
    %6 = vsyncpa [#allocation3], 0
    %7 = vsyncpa [#allocation4], 0
    // Predicated region
    $region2: #{tpu_custom_call.1} parent=1 // pred_check
      _
    $region3: #{tpu_custom_call.1} parent=1 // pred_check_branch
      %9 = sbr.rel (0) target = $region5
    $region4: #{tpu_custom_call.1} parent=1 // pred_region
      %s11 = ssub.s32 128, 128
      %12 = vsyncadd [#allocation3], %s11
      %s14 = sshll.u32 [#allocation2], 4
      %s15 = int_to_ptr.vmem [resolvable:$true] %s14
      %17 = dma.hbm_to_vmem [thread:$0]  %s0, 128, %s15, [#allocation3]
    $region5: #{tpu_custom_call.1} parent=1 // pred_fallthru
      _
    // Predicated region
    $region6: #{tpu_custom_call.1} parent=1 // pred_check
      _
    $region7: #{tpu_custom_call.1} parent=1 // pred_check_branch
      %19 = sbr.rel (0) target = $region9
    $region8: #{tpu_custom_call.1} parent=1 // pred_region
      %20 = dma.done [#allocation3], 128
    $region9: #{tpu_custom_call.1} parent=1 // pred_fallthru
      _
    %v21 = vld [vmem:[#allocation2] sm:$0xff]
    %v22 = vrot.slane %v21, 7
    %23 = vst [vmem:[#allocation5] sm:$0xff] %v22
    // Predicated region
    $region10: #{tpu_custom_call.1} parent=1 // pred_check
      _
    $region11: #{tpu_custom_call.1} parent=1 // pred_check_branch
      %25 = sbr.rel (0) target = $region13
    $region12: #{tpu_custom_call.1} parent=1 // pred_region
      %s27 = ssub.s32 128, 128
      %28 = vsyncadd [#allocation4], %s27
      %s30 = sshll.u32 [#allocation5], 4
      %s31 = int_to_ptr.vmem [resolvable:$true] %s30
      %33 = dma.vmem_to_hbm [thread:$0]  %s31, 128, %s1, [#allocation4]
    $region13: #{tpu_custom_call.1} parent=1 // pred_fallthru
      _
    // Predicated region
    $region14: #{tpu_custom_call.1} parent=1 // pred_check
      _
    $region15: #{tpu_custom_call.1} parent=1 // pred_check_branch
      %35 = sbr.rel (0) target = $region17
    $region16: #{tpu_custom_call.1} parent=1 // pred_region
      %36 = dma.done [#allocation4], 128
    $region17: #{tpu_custom_call.1} parent=1 // pred_fallthru
      _
    %37 = vsyncpa [#allocation3], 1
    %38 = vsyncpa [#allocation4], 1

</llo_original>
